<compile_context>
chip_gen: v6e
topology: v6e:2x2x1
jax: 0.10.0
libtpu: 0.0.40
codegen_flags: <defaults>
</compile_context>

<pallas_src>
import jax
import jax.numpy as jnp
from jax.experimental import pallas as pl
from jax.experimental.pallas import tpu as pltpu


def _vmem_budget():
    """Per-block VMEM budget + scoped vmem limit, chosen per TPU generation."""
    try:
        vmem_cap = pltpu.get_tpu_info().vmem_capacity_bytes
    except Exception:
        vmem_cap = 128 * 1024 * 1024  # assume v5e/v6e-class if query unavailable
    if vmem_cap <= 64 * 1024 * 1024:
        # v7x: 64 MiB per TC -> small tiles, default 32 MiB scoped limit.
        return 6 * 1024 * 1024, 32 * 1024 * 1024
    # v5e / v6e: 128 MiB VMEM -> bigger tiles, raised scoped limit.
    return 12 * 1024 * 1024, 48 * 1024 * 1024


def _pick_tile_rows(n_cls, seq_len, suffix_len, ctx_dim, itemsize,
                    per_buffer_budget_bytes, max_rows=512):
    """Class rows assembled per grid step, balanced so the last tile is ~full.

    Sized so the double-buffered (prefix + suffix + output) blocks stay within
    roughly 2x `per_buffer_budget_bytes`.
    """
    bytes_per_row = (1 + suffix_len + seq_len) * ctx_dim * itemsize
    rows = max(1, per_buffer_budget_bytes // bytes_per_row)
    rows = int(min(n_cls, rows, max_rows))
    # Balance: same tile count, but the trailing tile stays near full size
    # (avoids one short, masked-edge writeback step).
    n_tiles = pl.cdiv(n_cls, rows)
    rows = pl.cdiv(n_cls, n_tiles)
    return int(rows), int(n_tiles)


def multimodal_prompt_learner_forward(ctx, ctx_vision, token_prefix, token_suffix, n_cls):
    """Pallas implementation of MultiModalPromptLearner.forward().

    ctx:          (N, n_ctx, ctx_dim)
    ctx_vision:   (M, n_ctx_vision, 768)   -- returned unchanged
    token_prefix: (N*n_cls, 1, ctx_dim)
    token_suffix: (N*n_cls, suffix_len, ctx_dim)
    returns (prompts (N*n_cls, 1+n_ctx+suffix_len, ctx_dim), ctx_vision)
    """
    N, n_ctx, ctx_dim = ctx.shape
    total = token_prefix.shape[0]
    suffix_len = token_suffix.shape[1]
    seq_len = 1 + n_ctx + suffix_len
    assert total == N * n_cls

    # In the PyTorch module ctx / prefix / suffix all share clip_model.dtype;
    # promote defensively if they ever differ.  The cast itself happens
    # per-block inside the kernel (free VPU work hidden under the DMA), NOT as
    # a wrapper-side astype that would add a full extra HBM pass.
    out_dtype = jnp.promote_types(jnp.promote_types(ctx.dtype, token_prefix.dtype),
                                  token_suffix.dtype)

    # Free (metadata-only) reshapes: expose the (template, class) structure so
    # the class axis can be tiled while ctx is indexed by the template axis.
    prefix4 = token_prefix.reshape(N, n_cls, 1, ctx_dim)
    suffix4 = token_suffix.reshape(N, n_cls, suffix_len, ctx_dim)

    per_buffer_budget, vmem_limit = _vmem_budget()
    tile_rows, n_row_tiles = _pick_tile_rows(
        n_cls, seq_len, suffix_len, ctx_dim, jnp.dtype(out_dtype).itemsize,
        per_buffer_budget)

    def kernel(ctx_ref, prefix_ref, suffix_ref, out_ref):
        # ctx_ref:    (1, n_ctx, ctx_dim)            -- shared by all tile_rows rows
        # prefix_ref: (1, tile_rows, 1, ctx_dim)
        # suffix_ref: (1, tile_rows, suffix_len, ctx_dim)
        # out_ref:    (1, tile_rows, seq_len, ctx_dim)
        tr = out_ref.shape[1]
        # Cast to the output dtype in VMEM (no-op when dtypes already match).
        prefix = prefix_ref[...].astype(out_ref.dtype)
        suffix = suffix_ref[...].astype(out_ref.dtype)
        ctx_rows = jnp.broadcast_to(
            ctx_ref[...].astype(out_ref.dtype)[:, None, :, :],
            (1, tr, n_ctx, ctx_dim))
        # Assemble [prefix | ctx | suffix] along the seq axis and write the whole
        # block with a single full-width store (unmasked vst writeback).
        out_ref[...] = jnp.concatenate([prefix, ctx_rows, suffix], axis=2)

    prompts4 = pl.pallas_call(
        kernel,
        out_shape=jax.ShapeDtypeStruct((N, n_cls, seq_len, ctx_dim), out_dtype),
        grid=(N, n_row_tiles),
        in_specs=[
            # ctx block depends only on the template axis n.
            pl.BlockSpec((1, n_ctx, ctx_dim), lambda n, t: (n, 0, 0)),
            pl.BlockSpec((1, tile_rows, 1, ctx_dim), lambda n, t: (n, t, 0, 0)),
            pl.BlockSpec((1, tile_rows, suffix_len, ctx_dim), lambda n, t: (n, t, 0, 0)),
        ],
        out_specs=pl.BlockSpec((1, tile_rows, seq_len, ctx_dim),
                               lambda n, t: (n, t, 0, 0)),
        compiler_params=pltpu.CompilerParams(
            # All output blocks are disjoint -> both axes parallel so v7x's two
            # TensorCores split the copy.  No effect on single-TC v5e/v6e.
            dimension_semantics=("parallel", "parallel"),
            vmem_limit_bytes=vmem_limit),
    )(ctx, prefix4, suffix4)

    prompts = prompts4.reshape(N * n_cls, seq_len, ctx_dim)
    # ctx_vision is returned untouched by the original forward().
    return prompts, ctx_vision


def reference_forward(ctx, ctx_vision, token_prefix, token_suffix, n_cls):
    """Pure-JAX reference mirroring construct_prompts()."""
    N, n_ctx, d = ctx.shape
    c = jnp.broadcast_to(ctx[None], (n_cls, N, n_ctx, d))            # unsqueeze(0).expand
    c = jnp.transpose(c, (1, 0, 2, 3)).reshape(N * n_cls, n_ctx, d)  # permute + view
    prompts = jnp.concatenate([token_prefix, c, token_suffix], axis=1)
    return prompts, ctx_vision


if __name__ == "__main__":
    key = jax.random.PRNGKey(0)
    k1, k2, k3, k4 = jax.random.split(key, 4)

    # Small, module-consistent shapes.
    n_cls = 4            # number of class names
    N = 2                # number of text prompt templates
    M = 2                # number of vision prompt sets
    n_ctx = 4            # text context tokens
    n_ctx_vision = 4     # vision context tokens
    ctx_dim = 128        # text transformer width (ln_final.weight.shape[0])
    vis_dim = 768        # hard-coded 768 in the module
    seq_len = 16         # total prompt length (small stand-in for CLIP's 77)
    suffix_len = seq_len - 1 - n_ctx
    dtype = jnp.float32

    # Deterministic parameter / buffer init (std=0.02 normal, like nn.init.normal_).
    ctx = (0.02 * jax.random.normal(k1, (N, n_ctx, ctx_dim))).astype(dtype)
    ctx_vision = (0.02 * jax.random.normal(k2, (M, n_ctx_vision, vis_dim))).astype(dtype)
    # token_prefix / token_suffix stand in for the frozen CLIP token embeddings.
    token_prefix = jax.random.normal(k3, (N * n_cls, 1, ctx_dim)).astype(dtype)
    token_suffix = jax.random.normal(k4, (N * n_cls, suffix_len, ctx_dim)).astype(dtype)

    prompts, ctx_vision_out = multimodal_prompt_learner_forward(
        ctx, ctx_vision, token_prefix, token_suffix, n_cls)
    jax.block_until_ready(prompts)
    jax.block_until_ready(ctx_vision_out)

    ref_prompts, ref_vision = reference_forward(
        ctx, ctx_vision, token_prefix, token_suffix, n_cls)

    assert prompts.shape == (N * n_cls, seq_len, ctx_dim)
    assert ctx_vision_out.shape == (M, n_ctx_vision, vis_dim)
    # Pure data movement -> results must be bit-exact.
    assert jnp.array_equal(prompts, ref_prompts)
    assert jnp.array_equal(ctx_vision_out, ref_vision)

    print("KERNEL_OK")
</pallas_src>

<mosaic_0001>
module attributes {stable_mosaic.version = 11 : i64} {
  func.func @kernel(%arg0: i32, %arg1: i32, %arg2: memref<1x4x128xf32, #tpu.memory_space<vmem>>, %arg3: memref<1x4x1x128xf32, #tpu.memory_space<vmem>>, %arg4: memref<1x4x11x128xf32, #tpu.memory_space<vmem>>, %arg5: memref<1x4x16x128xf32, #tpu.memory_space<vmem>>) attributes {dimension_semantics = [#tpu.dimension_semantics<parallel>, #tpu.dimension_semantics<parallel>], iteration_bounds = array<i64: 2, 1>, scalar_prefetch = 0 : i64, scratch_operands = 0 : i64, tpu.core_type = #tpu.core_type<tc>, window_params = [{transform_indices = @transform_0, window_bounds = array<i64: 1, 4, 128>}, {transform_indices = @transform_1, window_bounds = array<i64: 1, 4, 1, 128>}, {transform_indices = @transform_2, window_bounds = array<i64: 1, 4, 11, 128>}, {transform_indices = @transform_3, window_bounds = array<i64: 1, 4, 16, 128>}]} {
    %c0 = arith.constant 0 : index
    %c0_0 = arith.constant 0 : index
    %c0_1 = arith.constant 0 : index
    %c0_2 = arith.constant 0 : index
    %0 = vector.load %arg3[%c0, %c0_0, %c0_1, %c0_2] : memref<1x4x1x128xf32, #tpu.memory_space<vmem>>, vector<1x4x1x128xf32>
    %c0_3 = arith.constant 0 : index
    %c0_4 = arith.constant 0 : index
    %c0_5 = arith.constant 0 : index
    %c0_6 = arith.constant 0 : index
    %1 = vector.load %arg4[%c0_3, %c0_4, %c0_5, %c0_6] : memref<1x4x11x128xf32, #tpu.memory_space<vmem>>, vector<1x4x11x128xf32>
    %c0_7 = arith.constant 0 : index
    %c0_8 = arith.constant 0 : index
    %c0_9 = arith.constant 0 : index
    %2 = vector.load %arg2[%c0_7, %c0_8, %c0_9] : memref<1x4x128xf32, #tpu.memory_space<vmem>>, vector<1x4x128xf32>
    %3 = vector.shape_cast %2 : vector<1x4x128xf32> to vector<1x1x4x128xf32>
    %4 = vector.shape_cast %3 : vector<1x1x4x128xf32> to vector<1x1x4x128xf32>
    %5 = vector.broadcast %4 : vector<1x1x4x128xf32> to vector<1x4x4x128xf32>
    %6 = tpu.concatenate %0, %5, %1 in 2 : vector<1x4x1x128xf32>, vector<1x4x4x128xf32>, vector<1x4x11x128xf32> -> vector<1x4x16x128xf32>
    %c0_10 = arith.constant 0 : index
    %c0_11 = arith.constant 0 : index
    %c0_12 = arith.constant 0 : index
    %c0_13 = arith.constant 0 : index
    %7 = vector.load %arg5[%c0_10, %c0_11, %c0_12, %c0_13] : memref<1x4x16x128xf32, #tpu.memory_space<vmem>>, vector<1x4x16x128xf32>
    tpu.vector_store %arg5[%c0_10, %c0_11, %c0_12, %c0_13], %6 {strides = array<i32>} : memref<1x4x16x128xf32, #tpu.memory_space<vmem>>, vector<1x4x16x128xf32>,
    return
  }
  func.func @transform_0(%arg0: i32, %arg1: i32) -> (i32, i32, i32) {
    %c0_i32 = arith.constant 0 : i32
    %c0_i32_0 = arith.constant 0 : i32
    %c0_i32_1 = arith.constant 0 : i32
    return %arg0, %c0_i32, %c0_i32_0 : i32, i32, i32
  }
  func.func @transform_1(%arg0: i32, %arg1: i32) -> (i32, i32, i32, i32) {
    %c0_i32 = arith.constant 0 : i32
    %c0_i32_0 = arith.constant 0 : i32
    %c0_i32_1 = arith.constant 0 : i32
    return %arg0, %arg1, %c0_i32, %c0_i32_0 : i32, i32, i32, i32
  }
  func.func @transform_2(%arg0: i32, %arg1: i32) -> (i32, i32, i32, i32) {
    %c0_i32 = arith.constant 0 : i32
    %c0_i32_0 = arith.constant 0 : i32
    %c0_i32_1 = arith.constant 0 : i32
    return %arg0, %arg1, %c0_i32, %c0_i32_0 : i32, i32, i32, i32
  }
  func.func @transform_3(%arg0: i32, %arg1: i32) -> (i32, i32, i32, i32) {
    %c0_i32 = arith.constant 0 : i32
    %c0_i32_0 = arith.constant 0 : i32
    %c0_i32_1 = arith.constant 0 : i32
    return %arg0, %arg1, %c0_i32, %c0_i32_0 : i32, i32, i32, i32
  }
}

</mosaic_0001>

<llo_original>
// kernel: tpu_custom_call.1
$region0: #{tpu_custom_call.1}
  #allocation0 [shape = 'u32[]', space=smem, size = 0x4, offset = 0x4, fixed_abs, tag = 'smem constant byte address 0x4 - core index']
  #allocation1 [shape = 'u32[144,128]{1,0:T(1,128)}', space=vmem, size = 0x12000, scoped, tag = 'internal scratch']
  %s0 = inlined_call_operand.vmem [shape: f32[2,4,128], index: 0, kind: input, shape index: {}]
  %s1 = inlined_call_operand.vmem [shape: f32[2,4,1,128], index: 1, kind: input, shape index: {}]
  %s2 = inlined_call_operand.vmem [shape: f32[2,4,11,128], index: 2, kind: input, shape index: {}]
  %s3 = inlined_call_operand.hbm [shape: f32[2,4,16,128], index: 3, kind: output, shape index: {}]
  %s4 = sld [smem:[#allocation0]]
  $region45: #{tpu_custom_call.1} parent=0
    _
  %s6 = ssub.s32 1, %s4
  %s7 = scalar_select 0, %s6, %s4
  $region1: #{tpu_custom_call.1} parent=0
    #allocation2 [shape = 'u8[65536]{0}', space=vmem, size = 0x10000, scoped, tag = 'output window, operand 0']
    #allocation3 [shape = 's32[2]{0}', space=sflag, size = 0x8, scoped, tag = 'scoped memory for tpu_custom_call.1']
    %8 = vsyncpa [#allocation3], 0
    %s9 = scalar_lea.sflag [#allocation3], 1
    %10 = vsyncpa %s9, 0
    loop: start=0, step=1, limit=4
    $region2: #{tpu_custom_call.1} parent=1 // loop_pre_header
      _
    $region3: #{tpu_custom_call.1} parent=1 // loop_header
      %s12 = sphi 0, %s16
      %p13 = scmp.ge.s32.totalorder %s12, 4
      %s19 = sphi 0, %s31
      %s20 = sphi 0, %s27
      %s21 = sphi 0, %s19
      %s22 = sphi 0, %s20
      %s23 = sphi 0, %s21
      %s24 = sphi 0, %s22
      %s34 = sphi 0, %s36
      %s37 = sphi 0, %s34
      %s38 = sphi 0, %s37
      %s54 = sphi 0, %s38
      %s62 = sphi 0, %s64
      %s65 = sphi 0, %s62
      %s66 = sphi 0, %s65
      %s82 = sphi 0, %s66
      %s90 = sphi 0, %s92
      %s93 = sphi 0, %s90
      %s94 = sphi 0, %s93
      %s110 = sphi 0, %s94
      %s118 = sphi 0, %s120
      %s121 = sphi 0, %s118
      %s122 = sphi 0, %s121
      %s138 = sphi 0, %s122
    $region4: #{tpu_custom_call.1} parent=1 // loop_header_branch
      %15 = sbr.rel (%p13) target = $region8
    $region5: #{tpu_custom_call.1} parent=1 // loop_body
      %s17 = ssub.s32 %s12, 1
      %s18 = ssub.s32 %s12, 2
      %s25 = sadd.s32 1, %s20
      %p26 = scmp.ge.s32.totalorder %s25, 1
      %s27 = scalar_select %p26, 0, %s25
      %s28 = sadd.s32 1, %s19
      %s29 = scalar_select %p26, %s28, %s19
      %p30 = scmp.ge.s32.totalorder %s29, 2
      %s31 = scalar_select %p30, 0, %s29
      %s32 = ssub.s32 %s19, %s31
      %p33 = scmp.eq.s32.totalorder %s32, 0
      %s35 = sadd.s32 %s34, 1
      %s36 = scalar_select %p33, %s34, %s35
      %p39 = pneg %p33
      %p40 = scmp.eq.s32.totalorder %s12, 1
      %p41 = por %p39, %p40
      %p42 = scmp.ne.s32.totalorder %s34, %s37
      %p43 = scmp.eq.s32.totalorder %s12, 0
      %p44 = por %p42, %p43
      %p45 = scmp.ne.s32.totalorder %s34, %s37
      %p46 = scmp.eq.s32.totalorder %s17, 1
      %p47 = por %p45, %p46
      %p48 = scmp.ne.s32.totalorder %s37, %s38
      %p49 = scmp.eq.s32.totalorder %s17, 0
      %p50 = por %p48, %p49
      %p51 = scmp.ne.s32.totalorder %s37, %s38
      %p52 = scmp.eq.s32.totalorder %s18, 1
      %p53 = por %p51, %p52
      %p55 = scmp.ne.s32.totalorder %s38, %s54
      %p56 = scmp.eq.s32.totalorder %s18, 0
      %p57 = por %p55, %p56
      %s58 = ssub.s32 %s19, %s31
      %s59 = ssub.s32 %s20, %s27
      %s60 = sor.u32 %s58, %s59
      %p61 = scmp.eq.s32.totalorder %s60, 0
      %s63 = sadd.s32 %s62, 1
      %s64 = scalar_select %p61, %s62, %s63
      %p67 = pneg %p61
      %p68 = scmp.eq.s32.totalorder %s12, 1
      %p69 = por %p67, %p68
      %p70 = scmp.ne.s32.totalorder %s62, %s65
      %p71 = scmp.eq.s32.totalorder %s12, 0
      %p72 = por %p70, %p71
      %p73 = scmp.ne.s32.totalorder %s62, %s65
      %p74 = scmp.eq.s32.totalorder %s17, 1
      %p75 = por %p73, %p74
      %p76 = scmp.ne.s32.totalorder %s65, %s66
      %p77 = scmp.eq.s32.totalorder %s17, 0
      %p78 = por %p76, %p77
      %p79 = scmp.ne.s32.totalorder %s65, %s66
      %p80 = scmp.eq.s32.totalorder %s18, 1
      %p81 = por %p79, %p80
      %p83 = scmp.ne.s32.totalorder %s66, %s82
      %p84 = scmp.eq.s32.totalorder %s18, 0
      %p85 = por %p83, %p84
      %s86 = ssub.s32 %s19, %s31
      %s87 = ssub.s32 %s20, %s27
      %s88 = sor.u32 %s86, %s87
      %p89 = scmp.eq.s32.totalorder %s88, 0
      %s91 = sadd.s32 %s90, 1
      %s92 = scalar_select %p89, %s90, %s91
      %p95 = pneg %p89
      %p96 = scmp.eq.s32.totalorder %s12, 1
      %p97 = por %p95, %p96
      %p98 = scmp.ne.s32.totalorder %s90, %s93
      %p99 = scmp.eq.s32.totalorder %s12, 0
      %p100 = por %p98, %p99
      %p101 = scmp.ne.s32.totalorder %s90, %s93
      %p102 = scmp.eq.s32.totalorder %s17, 1
      %p103 = por %p101, %p102
      %p104 = scmp.ne.s32.totalorder %s93, %s94
      %p105 = scmp.eq.s32.totalorder %s17, 0
      %p106 = por %p104, %p105
      %p107 = scmp.ne.s32.totalorder %s93, %s94
      %p108 = scmp.eq.s32.totalorder %s18, 1
      %p109 = por %p107, %p108
      %p111 = scmp.ne.s32.totalorder %s94, %s110
      %p112 = scmp.eq.s32.totalorder %s18, 0
      %p113 = por %p111, %p112
      %s114 = ssub.s32 %s19, %s31
      %s115 = ssub.s32 %s20, %s27
      %s116 = sor.u32 %s114, %s115
      %p117 = scmp.eq.s32.totalorder %s116, 0
      %s119 = sadd.s32 %s118, 1
      %s120 = scalar_select %p117, %s118, %s119
      %p123 = pneg %p117
      %p124 = scmp.eq.s32.totalorder %s12, 1
      %p125 = por %p123, %p124
      %p126 = scmp.ne.s32.totalorder %s118, %s121
      %p127 = scmp.eq.s32.totalorder %s12, 0
      %p128 = por %p126, %p127
      %p129 = scmp.ne.s32.totalorder %s118, %s121
      %p130 = scmp.eq.s32.totalorder %s17, 1
      %p131 = por %p129, %p130
      %p132 = scmp.ne.s32.totalorder %s121, %s122
      %p133 = scmp.eq.s32.totalorder %s17, 0
      %p134 = por %p132, %p133
      %p135 = scmp.ne.s32.totalorder %s121, %s122
      %p136 = scmp.eq.s32.totalorder %s18, 1
      %p137 = por %p135, %p136
      %p139 = scmp.ne.s32.totalorder %s122, %s138
      %p140 = scmp.eq.s32.totalorder %s18, 0
      %p141 = por %p139, %p140
      %p142 = scmp.le.s32.totalorder 1, %s12
      %p143 = scmp.lt.s32.totalorder %s12, 3
      %p144 = pnand %p142, %p143
      %p145 = pneg %p144
      // Predicated region
      $region9: #{tpu_custom_call.1} parent=5 // pred_check
        _
      $region10: #{tpu_custom_call.1} parent=5 // pred_check_branch
        %147 = sbr.rel (%p144) target = $region12
      $region11: #{tpu_custom_call.1} parent=5 // pred_region
        %s148 = ssub.s32 %s12, 1
      $region12: #{tpu_custom_call.1} parent=5 // pred_fallthru
        _
      %p149 = scmp.lt.s32.totalorder %s12, 2
      // Predicated region
      $region13: #{tpu_custom_call.1} parent=5 // pred_check
        %p150 = pneg %p149
      $region14: #{tpu_custom_call.1} parent=5 // pred_check_branch
        %152 = sbr.rel (%p150) target = $region16
      $region15: #{tpu_custom_call.1} parent=5 // pred_region
        // Predicated region
        $region17: #{tpu_custom_call.1} parent=15 // pred_check
          %p153 = pneg %p44
        $region18: #{tpu_custom_call.1} parent=15 // pred_check_branch
          %155 = sbr.rel (%p153) target = $region20
        $region19: #{tpu_custom_call.1} parent=15 // pred_region
          %p156 = scmp.lt.s32.totalorder %s19, 1
          %s157 = scalar_select %p156, %s19, 1
          %s158 = smul.addr %s157, 4
          %s159 = scalar_lea.vmem %s0, %s158
        $region20: #{tpu_custom_call.1} parent=15 // pred_fallthru
          _
        // Predicated region
        $region21: #{tpu_custom_call.1} parent=15 // pred_check
          %p160 = pneg %p72
        $region22: #{tpu_custom_call.1} parent=15 // pred_check_branch
          %162 = sbr.rel (%p160) target = $region24
        $region23: #{tpu_custom_call.1} parent=15 // pred_region
          %s163 = smul.u32 4, %s20
          %p164 = scmp.lt.s32.totalorder %s19, 1
          %s165 = scalar_select %p164, %s19, 1
          %p166 = scmp.lt.s32.totalorder %s163, 3
          %s167 = scalar_select %p166, %s163, 3
          %s168 = smul.addr %s165, 4
          %s169 = sadd.s32 %s167, %s168
          %s170 = scalar_lea.vmem %s1, %s169
          %s171 = smul.u32 4, %s20
        $region24: #{tpu_custom_call.1} parent=15 // pred_fallthru
          _
        // Predicated region
        $region25: #{tpu_custom_call.1} parent=15 // pred_check
          %p172 = pneg %p100
        $region26: #{tpu_custom_call.1} parent=15 // pred_check_branch
          %174 = sbr.rel (%p172) target = $region28
        $region27: #{tpu_custom_call.1} parent=15 // pred_region
          %s175 = smul.u32 4, %s20
          %p176 = scmp.lt.s32.totalorder %s19, 1
          %s177 = scalar_select %p176, %s19, 1
          %p178 = scmp.lt.s32.totalorder %s175, 3
          %s179 = scalar_select %p178, %s175, 3
          %s180 = smul.addr %s179, 2
          %s181 = smul.addr %s177, 8
          %s182 = sadd.s32 %s180, %s181
          %s183 = smul.addr %s182, 8
          %s184 = scalar_lea.vmem %s2, %s183
          %s185 = smul.u32 4, %s20
        $region28: #{tpu_custom_call.1} parent=15 // pred_fallthru
          _
      $region16: #{tpu_custom_call.1} parent=5 // pred_fallthru
        _
      %p186 = scmp.le.s32.totalorder 1, %s12
      %p187 = scmp.lt.s32.totalorder %s12, 3
      %p188 = pnand %p186, %p187
      %p189 = pneg %p188
      // Predicated region
      $region29: #{tpu_custom_call.1} parent=5 // pred_check
        _
      $region30: #{tpu_custom_call.1} parent=5 // pred_check_branch
        %191 = sbr.rel (%p188) target = $region32
      $region31: #{tpu_custom_call.1} parent=5 // pred_region
        %s192 = ssub.s32 %s12, 1
        %p193 = scmp.lt.s32.totalorder %s21, 1
        %s194 = scalar_select %p193, %s21, 1
        %s195 = smul.addr %s194, 4
        %s196 = scalar_lea.vmem %s0, %s195
        %p197 = pneg %p50
        %p198 = pneg %p47
        %s199 = smul.u32 4, %s22
        %p200 = scmp.lt.s32.totalorder %s21, 1
        %s201 = scalar_select %p200, %s21, 1
        %p202 = scmp.lt.s32.totalorder %s199, 3
        %s203 = scalar_select %p202, %s199, 3
        %s204 = smul.addr %s201, 4
        %s205 = sadd.s32 %s203, %s204
        %s206 = scalar_lea.vmem %s1, %s205
        %p207 = pneg %p78
        %p208 = pneg %p75
        %s209 = smul.u32 4, %s22
        %p210 = scmp.lt.s32.totalorder %s21, 1
        %s211 = scalar_select %p210, %s21, 1
        %p212 = scmp.lt.s32.totalorder %s209, 3
        %s213 = scalar_select %p212, %s209, 3
        %s214 = smul.addr %s213, 2
        %s215 = smul.addr %s211, 8
        %s216 = sadd.s32 %s214, %s215
        %s217 = smul.addr %s216, 8
        %s218 = scalar_lea.vmem %s2, %s217
        %p219 = pneg %p106
        %p220 = pneg %p103
        %p221 = pneg %p134
        %p222 = pneg %p131
        %s223 = sand.u32 %s121, 1
        %s224 = scalar_lea.sflag [#allocation3], %s223
        %s225 = sand.u32 %s121, 1
        %s226 = smul.addr %s225, 64
        %s227 = scalar_lea.vmem [#allocation2], %s226
        %p228 = scmp.lt.s32.totalorder %s21, 1
        %s229 = scalar_select %p228, %s21, 1
        %s230 = smul.addr %s229, 4
        %s231 = scalar_lea.vmem %s0, %s230
        %s232 = smul.u32 4, %s22
        %p233 = scmp.lt.s32.totalorder %s21, 1
        %s234 = scalar_select %p233, %s21, 1
        %p235 = scmp.lt.s32.totalorder %s232, 3
        %s236 = scalar_select %p235, %s232, 3
        %s237 = smul.addr %s234, 4
        %s238 = sadd.s32 %s236, %s237
        %s239 = scalar_lea.vmem %s1, %s238
        %s240 = smul.u32 4, %s22
        %s241 = smul.u32 4, %s22
        %p242 = scmp.lt.s32.totalorder %s21, 1
        %s243 = scalar_select %p242, %s21, 1
        %p244 = scmp.lt.s32.totalorder %s241, 3
        %s245 = scalar_select %p244, %s241, 3
        %s246 = smul.addr %s245, 2
        %s247 = smul.addr %s243, 8
        %s248 = sadd.s32 %s246, %s247
        %s249 = smul.addr %s248, 8
        %s250 = scalar_lea.vmem %s2, %s249
        %s251 = smul.u32 4, %s22
        %s252 = smul.u32 4, %s22
        %v253 = vld [vmem:[%s239] sm:$0x1]
        %v254 = vld [vmem:[%s239 + $0x1] sm:$0x1]
        %v255 = vld [vmem:[%s239 + $0x2] sm:$0x1]
        %v256 = vld [vmem:[%s239 + $0x3] sm:$0x1]
        %v257 = vld [vmem:[%s250] sm:$0xff]
        %v258 = vld [vmem:[%s250 + $0x8] sm:$0x7]
        %v259 = vld [vmem:[%s250 + $0x10] sm:$0xff]
        %v260 = vld [vmem:[%s250 + $0x18] sm:$0x7]
        %v261 = vld [vmem:[%s250 + $0x20] sm:$0xff]
        %v262 = vld [vmem:[%s250 + $0x28] sm:$0x7]
        %v263 = vld [vmem:[%s250 + $0x30] sm:$0xff]
        %v264 = vld [vmem:[%s250 + $0x38] sm:$0x7]
        %v265 = vld [vmem:[%s231] sm:$0xf]
        %v267 = vrot.slane %v265, 7
        %vm277 = vcmask 1044480
        %v278 = vrot.slane %v257, 3
        %v279 = vrot.slane %v258, 3
        %v280 = vsel %vm277, %v278, %v279
        %v281 = vrot.slane %v259, 3
        %v282 = vrot.slane %v260, 3
        %v283 = vsel %vm277, %v281, %v282
        %v284 = vrot.slane %v261, 3
        %v285 = vrot.slane %v262, 3
        %v286 = vsel %vm277, %v284, %v285
        %v287 = vrot.slane %v263, 3
        %v288 = vrot.slane %v264, 3
        %v289 = vsel %vm277, %v287, %v288
        %vm298 = vcmask 1040384
        %v299 = vsel %vm298, %v253, %v267
        %v300 = vsel %vm298, %v254, %v267
        %v301 = vsel %vm298, %v255, %v267
        %v302 = vsel %vm298, %v256, %v267
        %v303 = vsel %vm277, %v299, %v278
        %v304 = vsel %vm277, %v300, %v281
        %v305 = vsel %vm277, %v301, %v284
        %v306 = vsel %vm277, %v302, %v287
        %307 = vst [vmem:[%s227] sm:$0xff] %v303
        %308 = vst [vmem:[%s227 + $0x8] sm:$0xff] %v280
        %309 = vst [vmem:[%s227 + $0x10] sm:$0xff] %v304
        %310 = vst [vmem:[%s227 + $0x18] sm:$0xff] %v283
        %311 = vst [vmem:[%s227 + $0x20] sm:$0xff] %v305
        %312 = vst [vmem:[%s227 + $0x28] sm:$0xff] %v286
        %313 = vst [vmem:[%s227 + $0x30] sm:$0xff] %v306
        %314 = vst [vmem:[%s227 + $0x38] sm:$0xff] %v289
        %s315 = sand.u32 %s121, 1
        %s316 = scalar_lea.sflag [#allocation3], %s315
        %s317 = sand.u32 %s121, 1
        %s318 = smul.addr %s317, 64
        %s319 = scalar_lea.vmem [#allocation2], %s318
        // Predicated region
        $region33: #{tpu_custom_call.1} parent=31 // pred_check
          %p320 = pneg %p131
        $region34: #{tpu_custom_call.1} parent=31 // pred_check_branch
          %322 = sbr.rel (%p320) target = $region36
        $region35: #{tpu_custom_call.1} parent=31 // pred_region
          %s323 = smul.u32 4, %s22
          %s325 = ssub.s32 1024, 1024
          %326 = vsyncadd %s316, %s325
          %s327 = smul.addr %s323, 2
          %s328 = smul.addr %s21, 8
          %s329 = sadd.s32 %s327, %s328
          %s330 = smul.addr %s329, 128
          %s331 = scalar_lea.hbm %s3, %s330
          %s332 = sshll.u32 %s319, 4
          %s333 = int_to_ptr.vmem [resolvable:$true] %s332
          %338 = dma.vmem_to_hbm [thread:$0]  %s333, 1024, %s331, %s316, 128, 128, 8
        $region36: #{tpu_custom_call.1} parent=31 // pred_fallthru
          _
      $region32: #{tpu_custom_call.1} parent=5 // pred_fallthru
        _
      %p339 = scmp.le.s32.totalorder 2, %s12
      // Predicated region
      $region37: #{tpu_custom_call.1} parent=5 // pred_check
        %p340 = pneg %p339
      $region38: #{tpu_custom_call.1} parent=5 // pred_check_branch
        %342 = sbr.rel (%p340) target = $region40
      $region39: #{tpu_custom_call.1} parent=5 // pred_region
        %s343 = ssub.s32 %s12, 2
        // Predicated region
        $region41: #{tpu_custom_call.1} parent=39 // pred_check
          %p344 = pneg %p137
        $region42: #{tpu_custom_call.1} parent=39 // pred_check_branch
          %346 = sbr.rel (%p344) target = $region44
        $region43: #{tpu_custom_call.1} parent=39 // pred_region
          %s347 = sand.u32 %s122, 1
          %s348 = scalar_lea.sflag [#allocation3], %s347
          %s349 = sand.u32 %s122, 1
          %s350 = smul.addr %s349, 64
          %s351 = scalar_lea.vmem [#allocation2], %s350
          %352 = dma.done %s348, 1024
        $region44: #{tpu_custom_call.1} parent=39 // pred_fallthru
          _
      $region40: #{tpu_custom_call.1} parent=5 // pred_fallthru
        _
    $region6: #{tpu_custom_call.1} parent=1 // loop_footer
      %s16 = sadd.s32 1, %s12
    $region7: #{tpu_custom_call.1} parent=1 // loop_footer_branch
      %11 = sbr.rel target = $region3
    $region8: #{tpu_custom_call.1} parent=1 // loop_exit
      _
    %353 = vsyncpa [#allocation3], 1
    %s354 = scalar_lea.sflag [#allocation3], 1
    %355 = vsyncpa %s354, 1

</llo_original>
